<compile_context>
chip_gen: v7x
topology: tpu7x:2x2x1
jax: 0.10.0
libtpu: 0.0.40
codegen_flags: <defaults>
</compile_context>

<pallas_src>
import functools

import jax
import jax.numpy as jnp
from jax.experimental import pallas as pl
from jax.experimental.pallas import tpu as pltpu

FEAT_DIM = 1000   # sub_model output width (kwargs['num_classes'] is forced to 1000)
FEAT_PAD = 1024   # lane-padded feature width


def _round_up(v, m):
    return (v + m - 1) // m * m


def mohs_kernel(x_ref, rigs_ref, w1_ref, b1_ref, w2f_ref, w2r_ref, b2_ref,
                o_ref, acc_ref, *, inv_hw):
    # grid = (batch tiles, HW tiles); HW is the reduction axis (last).
    k = pl.program_id(1)

    @pl.when(k == 0)
    def _():
        acc_ref[...] = jnp.zeros_like(acc_ref)

    # Per-tile partial pooled sum: [TB, C, THW] -> [TB, C], accumulated in f32.
    acc_ref[...] += jnp.sum(x_ref[...].astype(jnp.float32), axis=-1)

    @pl.when(k == pl.num_programs(1) - 1)
    def _():
        pooled = acc_ref[...] * inv_hw                                   # [TB, C]
        feat = jnp.dot(pooled, w1_ref[...],
                       preferred_element_type=jnp.float32) + b1_ref[...]  # [TB, 1024]
        # fc(cat([feat, rigs], 1)) == feat @ W[:1000] + rigs @ W[1000:] + b
        out = jnp.dot(feat, w2f_ref[...], preferred_element_type=jnp.float32)
        out = out + rigs_ref[...].astype(jnp.float32) * w2r_ref[...]     # [TB,1]*[1,ncp]
        out = out + b2_ref[...]
        o_ref[...] = out.astype(o_ref.dtype)


def mohs_modals_forward(x, rigs, w1, b1, w2, b2):
    """x: [B, C, H, W] (NCHW), rigs: [B, 1], w1: [C, 1000], b1: [1000],
    w2: [1001, num_classes], b2: [num_classes] -> [B, num_classes] (f32)."""
    B, C, H, W = x.shape
    nc = w2.shape[1]
    HW = H * W
    elt = jnp.dtype(x.dtype).itemsize

    # --- tile sizing -------------------------------------------------------
    TB = 8                                   # batch tile (sublane-friendly)
    B_pad = _round_up(B, TB)
    c_pad_est = max(_round_up(C, 8), 8)      # sublane-padded channel estimate
    # Keep each streamed x block <= ~4 MiB so 2x double-buffering + weights fit
    # well under v7x's 64 MiB VMEM (and the 32 MiB default scoped limit).
    max_thw = max(128, (4 * 1024 * 1024) // (TB * c_pad_est * elt))
    max_thw = (max_thw // 128) * 128
    THW = min(_round_up(HW, 128), max_thw, 2048)
    HW_pad = _round_up(HW, THW)
    ncp = _round_up(nc, 128)

    # --- layout / zero-padding (exact: zeros do not change sums/matmuls) ---
    x3 = x.reshape(B, C, HW)
    x3 = jnp.pad(x3, ((0, B_pad - B), (0, 0), (0, HW_pad - HW)))
    rigs_p = jnp.pad(rigs, ((0, B_pad - B), (0, 0)))

    w1p = jnp.pad(w1.astype(jnp.float32), ((0, 0), (0, FEAT_PAD - FEAT_DIM)))
    b1p = jnp.pad(b1.astype(jnp.float32), (0, FEAT_PAD - FEAT_DIM)).reshape(1, FEAT_PAD)
    w2f = jnp.pad(w2[:FEAT_DIM].astype(jnp.float32),
                  ((0, FEAT_PAD - FEAT_DIM), (0, ncp - nc)))
    w2r = jnp.pad(w2[FEAT_DIM:].astype(jnp.float32), ((0, 0), (0, ncp - nc)))
    b2p = jnp.pad(b2.astype(jnp.float32), (0, ncp - nc)).reshape(1, ncp)

    grid = (B_pad // TB, HW_pad // THW)

    bytes_accessed = int(
        x3.size * elt + rigs_p.size * 4 + w1p.size * 4 + b1p.size * 4
        + w2f.size * 4 + w2r.size * 4 + b2p.size * 4 + B_pad * ncp * 4)
    flops = int(2 * B_pad * C * HW_pad            # pooled sum
                + 2 * B_pad * C * FEAT_PAD        # pooled @ w1
                + 2 * B_pad * FEAT_PAD * ncp)     # feat @ w2f

    kernel = functools.partial(mohs_kernel, inv_hw=1.0 / float(HW))

    out = pl.pallas_call(
        kernel,
        out_shape=jax.ShapeDtypeStruct((B_pad, ncp), jnp.float32),
        grid=grid,
        in_specs=[
            pl.BlockSpec((TB, C, THW), lambda b, k: (b, 0, k)),   # streamed x
            pl.BlockSpec((TB, 1), lambda b, k: (b, 0)),           # rigs (per batch tile)
            pl.BlockSpec((C, FEAT_PAD), lambda b, k: (0, 0)),     # resident weights
            pl.BlockSpec((1, FEAT_PAD), lambda b, k: (0, 0)),
            pl.BlockSpec((FEAT_PAD, ncp), lambda b, k: (0, 0)),
            pl.BlockSpec((1, ncp), lambda b, k: (0, 0)),
            pl.BlockSpec((1, ncp), lambda b, k: (0, 0)),
        ],
        out_specs=pl.BlockSpec((TB, ncp), lambda b, k: (b, 0)),
        scratch_shapes=[pltpu.VMEM((TB, C), jnp.float32)],        # pooled-sum acc
        compiler_params=pltpu.CompilerParams(
            dimension_semantics=("parallel", "arbitrary")),
        cost_estimate=pl.CostEstimate(flops=flops, transcendentals=0,
                                      bytes_accessed=bytes_accessed),
    )(x3, rigs_p, w1p, b1p, w2f, w2r, b2p)

    return out[:B, :nc]


def _reference(x, rigs, w1, b1, w2, b2):
    B, C, H, W = x.shape
    pooled = jnp.mean(x.reshape(B, C, H * W), axis=-1)
    feat = pooled @ w1 + b1
    return jnp.concatenate([feat, rigs], axis=1) @ w2 + b2


def _make_inputs(key, B, C, H, W, num_classes):
    kx, kr, k1, k2, k3, k4 = jax.random.split(key, 6)
    x = jax.random.normal(kx, (B, C, H, W), jnp.float32)
    rigs = jax.random.normal(kr, (B, 1), jnp.float32)
    w1 = jax.random.normal(k1, (C, FEAT_DIM), jnp.float32) * 0.02
    b1 = jax.random.normal(k2, (FEAT_DIM,), jnp.float32) * 0.02
    w2 = jax.random.normal(k3, (FEAT_DIM + 1, num_classes), jnp.float32) * 0.02
    b2 = jax.random.normal(k4, (num_classes,), jnp.float32) * 0.02
    return x, rigs, w1, b1, w2, b2


if __name__ == "__main__":
    key = jax.random.PRNGKey(0)
    k_a, k_b = jax.random.split(key)

    # Primary small config (matches the module's expected tuple input (x, rigs)).
    x, rigs, w1, b1, w2, b2 = _make_inputs(k_a, B=2, C=4, H=16, W=16, num_classes=8)
    out = jax.block_until_ready(mohs_modals_forward(x, rigs, w1, b1, w2, b2))
    ref = _reference(x, rigs, w1, b1, w2, b2)
    assert out.shape == (2, 8)
    assert jnp.allclose(out, ref, atol=1e-4, rtol=1e-4), "mismatch vs reference (cfg A)"

    # Second config exercising multi-tile HW streaming plus batch/HW/nc padding.
    x, rigs, w1, b1, w2, b2 = _make_inputs(k_b, B=3, C=5, H=50, W=50, num_classes=10)
    out = jax.block_until_ready(mohs_modals_forward(x, rigs, w1, b1, w2, b2))
    ref = _reference(x, rigs, w1, b1, w2, b2)
    assert out.shape == (3, 10)
    assert jnp.allclose(out, ref, atol=1e-4, rtol=1e-4), "mismatch vs reference (cfg B)"

    # TODO(synk): the real sub_model is an injected backbone factory; a global-avg-pool +
    # Linear(C, 1000) stand-in is used here since no concrete backbone is specified.
    print("KERNEL_OK")
</pallas_src>

<mosaic_0001>
module attributes {stable_mosaic.version = 11 : i64} {
  func.func @mohs_kernel(%arg0: i32, %arg1: i32, %arg2: memref<8x4x256xf32, #tpu.memory_space<vmem>>, %arg3: memref<8x1xf32, #tpu.memory_space<vmem>>, %arg4: memref<4x1024xf32, #tpu.memory_space<vmem>>, %arg5: memref<1x1024xf32, #tpu.memory_space<vmem>>, %arg6: memref<1024x128xf32, #tpu.memory_space<vmem>>, %arg7: memref<1x128xf32, #tpu.memory_space<vmem>>, %arg8: memref<1x128xf32, #tpu.memory_space<vmem>>, %arg9: memref<8x128xf32, #tpu.memory_space<vmem>>, %arg10: memref<8x4xf32, #tpu.memory_space<vmem>>) attributes {dimension_semantics = [#tpu.dimension_semantics<parallel>, #tpu.dimension_semantics<arbitrary>], iteration_bounds = array<i64: 1, 1>, scalar_prefetch = 0 : i64, scratch_operands = 1 : i64, tpu.core_type = #tpu.core_type<tc>, window_params = [{transform_indices = @transform_0, window_bounds = array<i64: 8, 4, 256>}, {transform_indices = @transform_1, window_bounds = array<i64: 8, 1>}, {pipeline_mode = #tpu.pipeline_mode<synchronous>, transform_indices = @transform_2, window_bounds = array<i64: 4, 1024>}, {pipeline_mode = #tpu.pipeline_mode<synchronous>, transform_indices = @transform_3, window_bounds = array<i64: 1, 1024>}, {pipeline_mode = #tpu.pipeline_mode<synchronous>, transform_indices = @transform_4, window_bounds = array<i64: 1024, 128>}, {pipeline_mode = #tpu.pipeline_mode<synchronous>, transform_indices = @transform_5, window_bounds = array<i64: 1, 128>}, {pipeline_mode = #tpu.pipeline_mode<synchronous>, transform_indices = @transform_6, window_bounds = array<i64: 1, 128>}, {transform_indices = @transform_7, window_bounds = array<i64: 8, 128>}]} {
    %c0_i32 = arith.constant 0 : i32
    %0 = arith.cmpi eq, %arg1, %c0_i32 : i32
    %1 = arith.extui %0 : i1 to i32
    %c0_i32_0 = arith.constant 0 : i32
    %2 = arith.cmpi ne, %1, %c0_i32_0 : i32
    scf.if %2 {
      %cst_9 = arith.constant 0.000000e+00 : f32
      %11 = vector.broadcast %cst_9 : f32 to vector<8x4xf32>
      %c0_10 = arith.constant 0 : index
      %c0_11 = arith.constant 0 : index
      %12 = vector.load %arg10[%c0_10, %c0_11] : memref<8x4xf32, #tpu.memory_space<vmem>>, vector<8x4xf32>
      tpu.vector_store %arg10[%c0_10, %c0_11], %11 {strides = array<i32>} : memref<8x4xf32, #tpu.memory_space<vmem>>, vector<8x4xf32>,
    } else {
    }
    %c0 = arith.constant 0 : index
    %c0_1 = arith.constant 0 : index
    %3 = vector.load %arg10[%c0, %c0_1] : memref<8x4xf32, #tpu.memory_space<vmem>>, vector<8x4xf32>
    %c0_2 = arith.constant 0 : index
    %c0_3 = arith.constant 0 : index
    %c0_4 = arith.constant 0 : index
    %4 = vector.load %arg2[%c0_2, %c0_3, %c0_4] : memref<8x4x256xf32, #tpu.memory_space<vmem>>, vector<8x4x256xf32>
    %cst = arith.constant dense<0.000000e+00> : vector<8x4xf32>
    %5 = vector.multi_reduction <add>, %4, %cst [2] : vector<8x4x256xf32> to vector<8x4xf32>
    %6 = arith.addf %3, %5 : vector<8x4xf32>
    %c0_5 = arith.constant 0 : index
    %c0_6 = arith.constant 0 : index
    %7 = vector.load %arg10[%c0_5, %c0_6] : memref<8x4xf32, #tpu.memory_space<vmem>>, vector<8x4xf32>
    tpu.vector_store %arg10[%c0_5, %c0_6], %6 {strides = array<i32>} : memref<8x4xf32, #tpu.memory_space<vmem>>, vector<8x4xf32>,
    %c0_i32_7 = arith.constant 0 : i32
    %8 = arith.cmpi eq, %arg1, %c0_i32_7 : i32
    %9 = arith.extui %8 : i1 to i32
    %c0_i32_8 = arith.constant 0 : i32
    %10 = arith.cmpi ne, %9, %c0_i32_8 : i32
    scf.if %10 {
      %c0_9 = arith.constant 0 : index
      %c0_10 = arith.constant 0 : index
      %11 = vector.load %arg10[%c0_9, %c0_10] : memref<8x4xf32, #tpu.memory_space<vmem>>, vector<8x4xf32>
      %cst_11 = arith.constant 3.906250e-03 : f32
      %12 = vector.broadcast %cst_11 : f32 to vector<8x4xf32>
      %13 = arith.mulf %11, %12 : vector<8x4xf32>
      %c0_12 = arith.constant 0 : index
      %c0_13 = arith.constant 0 : index
      %14 = vector.load %arg4[%c0_12, %c0_13] : memref<4x1024xf32, #tpu.memory_space<vmem>>, vector<4x1024xf32>
      %cst_14 = arith.constant dense<0.000000e+00> : vector<8x1024xf32>
      %15 = tpu.matmul %13, %14, %cst_14 {dimension_numbers = #tpu.dot_dimension_numbers<[1], [0], [0], [1], [0, 0, 1, 1], [], []>} : vector<8x4xf32>, vector<4x1024xf32>, vector<8x1024xf32> -> vector<8x1024xf32>
      %c0_15 = arith.constant 0 : index
      %c0_16 = arith.constant 0 : index
      %16 = vector.load %arg5[%c0_15, %c0_16] : memref<1x1024xf32, #tpu.memory_space<vmem>>, vector<1x1024xf32>
      %17 = vector.broadcast %16 : vector<1x1024xf32> to vector<8x1024xf32>
      %18 = arith.addf %15, %17 : vector<8x1024xf32>
      %c0_17 = arith.constant 0 : index
      %c0_18 = arith.constant 0 : index
      %19 = vector.load %arg6[%c0_17, %c0_18] : memref<1024x128xf32, #tpu.memory_space<vmem>>, vector<1024x128xf32>
      %cst_19 = arith.constant dense<0.000000e+00> : vector<8x128xf32>
      %20 = tpu.matmul %18, %19, %cst_19 {dimension_numbers = #tpu.dot_dimension_numbers<[1], [0], [0], [1], [0, 0, 1, 1], [], []>} : vector<8x1024xf32>, vector<1024x128xf32>, vector<8x128xf32> -> vector<8x128xf32>
      %c0_20 = arith.constant 0 : index
      %c0_21 = arith.constant 0 : index
      %21 = vector.load %arg3[%c0_20, %c0_21] : memref<8x1xf32, #tpu.memory_space<vmem>>, vector<8x1xf32>
      %c0_22 = arith.constant 0 : index
      %c0_23 = arith.constant 0 : index
      %22 = vector.load %arg7[%c0_22, %c0_23] : memref<1x128xf32, #tpu.memory_space<vmem>>, vector<1x128xf32>
      %23 = vector.broadcast %21 : vector<8x1xf32> to vector<8x128xf32>
      %24 = vector.broadcast %22 : vector<1x128xf32> to vector<8x128xf32>
      %25 = arith.mulf %23, %24 : vector<8x128xf32>
      %26 = arith.addf %20, %25 : vector<8x128xf32>
      %c0_24 = arith.constant 0 : index
      %c0_25 = arith.constant 0 : index
      %27 = vector.load %arg8[%c0_24, %c0_25] : memref<1x128xf32, #tpu.memory_space<vmem>>, vector<1x128xf32>
      %28 = vector.broadcast %27 : vector<1x128xf32> to vector<8x128xf32>
      %29 = arith.addf %26, %28 : vector<8x128xf32>
      %c0_26 = arith.constant 0 : index
      %c0_27 = arith.constant 0 : index
      %30 = vector.load %arg9[%c0_26, %c0_27] : memref<8x128xf32, #tpu.memory_space<vmem>>, vector<8x128xf32>
      tpu.vector_store %arg9[%c0_26, %c0_27], %29 {strides = array<i32>} : memref<8x128xf32, #tpu.memory_space<vmem>>, vector<8x128xf32>,
    } else {
    }
    return
  }
  func.func @transform_0(%arg0: i32, %arg1: i32) -> (i32, i32, i32) {
    %c0_i32 = arith.constant 0 : i32
    %c0_i32_0 = arith.constant 0 : i32
    return %arg0, %c0_i32, %arg1 : i32, i32, i32
  }
  func.func @transform_1(%arg0: i32, %arg1: i32) -> (i32, i32) {
    %c0_i32 = arith.constant 0 : i32
    %c0_i32_0 = arith.constant 0 : i32
    return %arg0, %c0_i32 : i32, i32
  }
  func.func @transform_2(%arg0: i32, %arg1: i32) -> (i32, i32) {
    %c0_i32 = arith.constant 0 : i32
    %c0_i32_0 = arith.constant 0 : i32
    %c0_i32_1 = arith.constant 0 : i32
    return %c0_i32, %c0_i32_0 : i32, i32
  }
  func.func @transform_3(%arg0: i32, %arg1: i32) -> (i32, i32) {
    %c0_i32 = arith.constant 0 : i32
    %c0_i32_0 = arith.constant 0 : i32
    %c0_i32_1 = arith.constant 0 : i32
    return %c0_i32, %c0_i32_0 : i32, i32
  }
  func.func @transform_4(%arg0: i32, %arg1: i32) -> (i32, i32) {
    %c0_i32 = arith.constant 0 : i32
    %c0_i32_0 = arith.constant 0 : i32
    %c0_i32_1 = arith.constant 0 : i32
    return %c0_i32, %c0_i32_0 : i32, i32
  }
  func.func @transform_5(%arg0: i32, %arg1: i32) -> (i32, i32) {
    %c0_i32 = arith.constant 0 : i32
    %c0_i32_0 = arith.constant 0 : i32
    %c0_i32_1 = arith.constant 0 : i32
    return %c0_i32, %c0_i32_0 : i32, i32
  }
  func.func @transform_6(%arg0: i32, %arg1: i32) -> (i32, i32) {
    %c0_i32 = arith.constant 0 : i32
    %c0_i32_0 = arith.constant 0 : i32
    %c0_i32_1 = arith.constant 0 : i32
    return %c0_i32, %c0_i32_0 : i32, i32
  }
  func.func @transform_7(%arg0: i32, %arg1: i32) -> (i32, i32) {
    %c0_i32 = arith.constant 0 : i32
    %c0_i32_0 = arith.constant 0 : i32
    return %arg0, %c0_i32 : i32, i32
  }
}

</mosaic_0001>

<llo_original>
// kernel: tpu_custom_call.1
$region0: #{tpu_custom_call.1}
  #allocation0 [shape = 'u32[]', space=smem, size = 0x4, offset = 0x4, fixed_abs, tag = 'smem constant byte address 0x4 - core index']
  #allocation1 [shape = 'u32[144,128]{1,0:T(1,128)}', space=vmem, size = 0x12000, scoped, tag = 'internal scratch']
  #allocation2 [shape = 'f32[8,4]{1,0:T(8,128)}', space=vmem, size = 0x1000, scoped, tag = 'scratch operand']
  %s0 = inlined_call_operand.hbm [shape: f32[8,4,256], index: 0, kind: input, shape index: {}]
  %s1 = inlined_call_operand.vmem [shape: f32[8,1], index: 1, kind: input, shape index: {}]
  %s2 = inlined_call_operand.hbm [shape: f32[4,1024], index: 2, kind: input, shape index: {}]
  %s3 = inlined_call_operand.vmem [shape: f32[1,1024], index: 3, kind: input, shape index: {}]
  %s4 = inlined_call_operand.hbm [shape: f32[1024,128], index: 4, kind: input, shape index: {}]
  %s5 = inlined_call_operand.vmem [shape: f32[1,128], index: 5, kind: input, shape index: {}]
  %s6 = inlined_call_operand.vmem [shape: f32[1,128], index: 6, kind: input, shape index: {}]
  %s7 = inlined_call_operand.hbm [shape: f32[8,128], index: 7, kind: output, shape index: {}]
  %s8 = sld [smem:[#allocation0]]
  $region58: #{tpu_custom_call.1} parent=0
    _
  %s10 = ssub.s32 1, %s8
  %s11 = scalar_select 0, %s10, %s8
  $region1: #{tpu_custom_call.1} parent=0
    #allocation3 [shape = 'u8[32768]{0}', space=vmem, size = 0x8000, scoped, tag = 'input window, operand 0, single buffered']
    #allocation4 [shape = 's32[1]{0}', space=sflag, size = 0x4, scoped, tag = 'scoped memory for tpu_custom_call.1']
    #allocation5 [shape = 's32[1]{0}', space=sflag, size = 0x4, scoped, tag = 'scoped memory for tpu_custom_call.1']
    #allocation6 [shape = 'u8[16384]{0}', space=vmem, size = 0x4000, scoped, tag = 'input window, operand 2, single buffered']
    #allocation7 [shape = 's32[1]{0}', space=sflag, size = 0x4, scoped, tag = 'scoped memory for tpu_custom_call.1']
    #allocation8 [shape = 'u8[524288]{0}', space=vmem, size = 0x80000, scoped, tag = 'input window, operand 4, single buffered']
    #allocation9 [shape = 'u8[4096]{0}', space=vmem, size = 0x1000, scoped, tag = 'output window, operand 0, single buffered']
    %12 = vsyncpa [#allocation4], 0
    %13 = vsyncpa [#allocation7], 0
    %14 = vsyncpa [#allocation5], 0
    // Predicated region
    $region2: #{tpu_custom_call.1} parent=1 // pred_check
      _
    $region3: #{tpu_custom_call.1} parent=1 // pred_check_branch
      %16 = sbr.rel (0) target = $region5
    $region4: #{tpu_custom_call.1} parent=1 // pred_region
      %s18 = ssub.s32 1024, 1024
      %19 = vsyncadd [#allocation4], %s18
      %s20 = sshll.u32 [#allocation3], 4
      %s21 = int_to_ptr.vmem [resolvable:$true] %s20
      %26 = dma.hbm_to_vmem [thread:$0]  %s0, 1024, %s21, [#allocation4], 128, 128, 8
    $region5: #{tpu_custom_call.1} parent=1 // pred_fallthru
      _
    // Predicated region
    $region6: #{tpu_custom_call.1} parent=1 // pred_check
      _
    $region7: #{tpu_custom_call.1} parent=1 // pred_check_branch
      %28 = sbr.rel (0) target = $region9
    $region8: #{tpu_custom_call.1} parent=1 // pred_region
      _
    $region9: #{tpu_custom_call.1} parent=1 // pred_fallthru
      _
    // Predicated region
    $region10: #{tpu_custom_call.1} parent=1 // pred_check
      _
    $region11: #{tpu_custom_call.1} parent=1 // pred_check_branch
      %30 = sbr.rel (0) target = $region13
    $region12: #{tpu_custom_call.1} parent=1 // pred_region
      %s32 = ssub.s32 512, 512
      %33 = vsyncadd [#allocation7], %s32
      %s35 = sshll.u32 [#allocation6], 4
      %s36 = int_to_ptr.vmem [resolvable:$true] %s35
      %38 = dma.hbm_to_vmem [thread:$0]  %s2, 512, %s36, [#allocation7]
    $region13: #{tpu_custom_call.1} parent=1 // pred_fallthru
      _
    // Predicated region
    $region14: #{tpu_custom_call.1} parent=1 // pred_check
      _
    $region15: #{tpu_custom_call.1} parent=1 // pred_check_branch
      %40 = sbr.rel (0) target = $region17
    $region16: #{tpu_custom_call.1} parent=1 // pred_region
      _
    $region17: #{tpu_custom_call.1} parent=1 // pred_fallthru
      _
    // Predicated region
    $region18: #{tpu_custom_call.1} parent=1 // pred_check
      _
    $region19: #{tpu_custom_call.1} parent=1 // pred_check_branch
      %42 = sbr.rel (0) target = $region21
    $region20: #{tpu_custom_call.1} parent=1 // pred_region
      %s44 = ssub.s32 16384, 16384
      %45 = vsyncadd [#allocation7], %s44
      %s46 = sshll.u32 [#allocation8], 4
      %s47 = int_to_ptr.vmem [resolvable:$true] %s46
      %52 = dma.hbm_to_vmem [thread:$0]  %s4, 16384, %s47, [#allocation7], 128, 128, 8
    $region21: #{tpu_custom_call.1} parent=1 // pred_fallthru
      _
    // Predicated region
    $region22: #{tpu_custom_call.1} parent=1 // pred_check
      _
    $region23: #{tpu_custom_call.1} parent=1 // pred_check_branch
      %54 = sbr.rel (0) target = $region25
    $region24: #{tpu_custom_call.1} parent=1 // pred_region
      _
    $region25: #{tpu_custom_call.1} parent=1 // pred_fallthru
      _
    // Predicated region
    $region26: #{tpu_custom_call.1} parent=1 // pred_check
      _
    $region27: #{tpu_custom_call.1} parent=1 // pred_check_branch
      %56 = sbr.rel (0) target = $region29
    $region28: #{tpu_custom_call.1} parent=1 // pred_region
      _
    $region29: #{tpu_custom_call.1} parent=1 // pred_fallthru
      _
    // Predicated region
    $region30: #{tpu_custom_call.1} parent=1 // pred_check
      _
    $region31: #{tpu_custom_call.1} parent=1 // pred_check_branch
      %58 = sbr.rel (0) target = $region33
    $region32: #{tpu_custom_call.1} parent=1 // pred_region
      %59 = dma.done [#allocation4], 1024
    $region33: #{tpu_custom_call.1} parent=1 // pred_fallthru
      _
    // Predicated region
    $region34: #{tpu_custom_call.1} parent=1 // pred_check
      _
    $region35: #{tpu_custom_call.1} parent=1 // pred_check_branch
      %61 = sbr.rel (0) target = $region37
    $region36: #{tpu_custom_call.1} parent=1 // pred_region
      %62 = dma.done [#allocation7], 512
    $region37: #{tpu_custom_call.1} parent=1 // pred_fallthru
      _
    // Predicated region
    $region38: #{tpu_custom_call.1} parent=1 // pred_check
      _
    $region39: #{tpu_custom_call.1} parent=1 // pred_check_branch
      %64 = sbr.rel (0) target = $region41
    $region40: #{tpu_custom_call.1} parent=1 // pred_region
      %65 = dma.done [#allocation7], 16384
    $region41: #{tpu_custom_call.1} parent=1 // pred_fallthru
      _
    %p66 = scmp.eq.s32.totalorder 0, 0
    // Predicated region
    $region42: #{tpu_custom_call.1} parent=1 // pred_check
      %p67 = pneg %p66
    $region43: #{tpu_custom_call.1} parent=1 // pred_check_branch
      %69 = sbr.rel (%p67) target = $region45
    $region44: #{tpu_custom_call.1} parent=1 // pred_region
      %vm70 = vcmask 31744
      %71 = vst.msk [vmem:[#allocation2] sm:$0xff] %vm70, 0.0
    $region45: #{tpu_custom_call.1} parent=1 // pred_fallthru
      _
    %v72 = vld [vmem:[#allocation2] sm:$0xff]
    %v73 = vld [vmem:[#allocation3] sm:$0xff]
    %v74 = vld [vmem:[#allocation3 + $0x8] sm:$0xff]
    %v75 = vld [vmem:[#allocation3 + $0x10] sm:$0xff]
    %v76 = vld [vmem:[#allocation3 + $0x18] sm:$0xff]
    %v77 = vld [vmem:[#allocation3 + $0x20] sm:$0xff]
    %v78 = vld [vmem:[#allocation3 + $0x28] sm:$0xff]
    %v79 = vld [vmem:[#allocation3 + $0x30] sm:$0xff]
    %v80 = vld [vmem:[#allocation3 + $0x38] sm:$0xff]
    %v89 = vcombine.high %v73, %v73
    %v90 = vcombine.high %v74, %v74
    %v91 = vcombine.high %v75, %v75
    %v92 = vcombine.high %v76, %v76
    %v93 = vcombine.high %v77, %v77
    %v94 = vcombine.high %v78, %v78
    %v95 = vcombine.high %v79, %v79
    %v96 = vcombine.high %v80, %v80
    %vm105 = vcmask 1043456
    %v106 = vsel %vm105, %v73, 0.0
    %v107 = vsel %vm105, %v89, 0.0
    %v108 = vadd.f32 %v106, %v107
    %109 = vadd.xlane.f32.xlu0 %v108
    %v110 = vpop.xlane.xlu0 %109
    %v111 = vsel %vm105, %v74, 0.0
    %v112 = vsel %vm105, %v90, 0.0
    %v113 = vadd.f32 %v111, %v112
    %114 = vadd.xlane.f32.xlu0 %v113
    %v115 = vpop.xlane.xlu0 %114
    %v116 = vsel %vm105, %v75, 0.0
    %v117 = vsel %vm105, %v91, 0.0
    %v118 = vadd.f32 %v116, %v117
    %119 = vadd.xlane.f32.xlu0 %v118
    %v120 = vpop.xlane.xlu0 %119
    %v121 = vsel %vm105, %v76, 0.0
    %v122 = vsel %vm105, %v92, 0.0
    %v123 = vadd.f32 %v121, %v122
    %124 = vadd.xlane.f32.xlu0 %v123
    %v125 = vpop.xlane.xlu0 %124
    %v126 = vsel %vm105, %v77, 0.0
    %v127 = vsel %vm105, %v93, 0.0
    %v128 = vadd.f32 %v126, %v127
    %129 = vadd.xlane.f32.xlu0 %v128
    %v130 = vpop.xlane.xlu0 %129
    %v131 = vsel %vm105, %v78, 0.0
    %v132 = vsel %vm105, %v94, 0.0
    %v133 = vadd.f32 %v131, %v132
    %134 = vadd.xlane.f32.xlu0 %v133
    %v135 = vpop.xlane.xlu0 %134
    %v136 = vsel %vm105, %v79, 0.0
    %v137 = vsel %vm105, %v95, 0.0
    %v138 = vadd.f32 %v136, %v137
    %139 = vadd.xlane.f32.xlu0 %v138
    %v140 = vpop.xlane.xlu0 %139
    %v141 = vsel %vm105, %v80, 0.0
    %v142 = vsel %vm105, %v96, 0.0
    %v143 = vadd.f32 %v141, %v142
    %144 = vadd.xlane.f32.xlu0 %v143
    %v145 = vpop.xlane.xlu0 %144
    %v154 = vlaneseq
    %v155 = vand.u32 %v154, 127
    %v156 = vlaneseq
    %v157 = vshrl.u32 %v156, 7
    %v158 = vsub.s32 %v155, %v157
    %v159 = vrot.slane %v110, %v158
    %v160 = vlaneseq
    %v161 = vshrl.u32 %v160, 7
    %v162 = vsub.s32 %v155, %v161
    %v163 = vrot.slane %v115, %v162
    %v164 = vlaneseq
    %v165 = vshrl.u32 %v164, 7
    %v166 = vsub.s32 %v155, %v165
    %v167 = vrot.slane %v120, %v166
    %v168 = vlaneseq
    %v169 = vshrl.u32 %v168, 7
    %v170 = vsub.s32 %v155, %v169
    %v171 = vrot.slane %v125, %v170
    %v172 = vlaneseq
    %v173 = vshrl.u32 %v172, 7
    %v174 = vsub.s32 %v155, %v173
    %v175 = vrot.slane %v130, %v174
    %v176 = vlaneseq
    %v177 = vshrl.u32 %v176, 7
    %v178 = vsub.s32 %v155, %v177
    %v179 = vrot.slane %v135, %v178
    %v180 = vlaneseq
    %v181 = vshrl.u32 %v180, 7
    %v182 = vsub.s32 %v155, %v181
    %v183 = vrot.slane %v140, %v182
    %v184 = vlaneseq
    %v185 = vshrl.u32 %v184, 7
    %v186 = vsub.s32 %v155, %v185
    %v187 = vrot.slane %v145, %v186
    %vm188 = vcmask 1041409
    %v189 = vsel %vm188, %v163, %v159
    %vm190 = vcmask 1042434
    %v191 = vsel %vm190, %v167, %v189
    %vm192 = vcmask 1043459
    %v193 = vsel %vm192, %v171, %v191
    %vm194 = vcmask 1044484
    %v195 = vsel %vm194, %v175, %v193
    %vm196 = vcmask 1045509
    %v197 = vsel %vm196, %v179, %v195
    %vm198 = vcmask 1046534
    %v199 = vsel %vm198, %v183, %v197
    %vm200 = vcmask 1047559
    %v201 = vsel %vm200, %v187, %v199
    %v203 = vadd.f32 %v72, %v201
    %vm204 = vcmask 31744
    %205 = vst.msk [vmem:[#allocation2] sm:$0xff] %vm204, %v203
    // Predicated region
    $region46: #{tpu_custom_call.1} parent=1 // pred_check
      %p206 = pneg %p66
    $region47: #{tpu_custom_call.1} parent=1 // pred_check_branch
      %208 = sbr.rel (%p206) target = $region49
    $region48: #{tpu_custom_call.1} parent=1 // pred_region
      %v209 = vld [vmem:[#allocation2] sm:$0xff]
      %v210 = vmul.f32 %v209, 0.00390625
      %v211 = vld [vmem:[#allocation6] sm:$0xff]
      %v212 = vld [vmem:[#allocation6 + $0x8] sm:$0xff]
      %v213 = vld [vmem:[#allocation6 + $0x10] sm:$0xff]
      %v214 = vld [vmem:[#allocation6 + $0x18] sm:$0xff]
      %v215 = vld [vmem:[%s3] sm:$0xff]
      %v217 = vlaneseq
      %v218 = vshrl.u32 %v217, 7
      %v219 = vsub.s32 0, %v218
      %v220 = vrot.slane %v215, %v219
      %v221 = vlaneseq
      %v222 = vshrl.u32 %v221, 7
      %v223 = vsub.s32 1, %v222
      %v224 = vrot.slane %v215, %v223
      %v225 = vlaneseq
      %v226 = vshrl.u32 %v225, 7
      %v227 = vsub.s32 2, %v226
      %v228 = vrot.slane %v215, %v227
      %v229 = vlaneseq
      %v230 = vshrl.u32 %v229, 7
      %v231 = vsub.s32 3, %v230
      %v232 = vrot.slane %v215, %v231
      %v233 = vlaneseq
      %v234 = vshrl.u32 %v233, 7
      %v235 = vsub.s32 4, %v234
      %v236 = vrot.slane %v215, %v235
      %v237 = vlaneseq
      %v238 = vshrl.u32 %v237, 7
      %v239 = vsub.s32 5, %v238
      %v240 = vrot.slane %v215, %v239
      %v241 = vlaneseq
      %v242 = vshrl.u32 %v241, 7
      %v243 = vsub.s32 6, %v242
      %v244 = vrot.slane %v215, %v243
      %v245 = vlaneseq
      %v246 = vshrl.u32 %v245, 7
      %v247 = vsub.s32 7, %v246
      %v248 = vrot.slane %v215, %v247
      %v261 = vcombine.high %v211, %v211
      %v262 = vcombine.high %v212, %v212
      %v263 = vcombine.high %v213, %v213
      %v264 = vcombine.high %v214, %v214
      %v266 = vsel %vm204, %v210, 0
      %v268 = vsel %vm105, %v211, 0
      %v270 = vsel %vm105, %v261, 0
      %v272 = vsel %vm105, %v212, 0
      %v274 = vsel %vm105, %v262, 0
      %v276 = vsel %vm105, %v213, 0
      %v278 = vsel %vm105, %v263, 0
      %v280 = vsel %vm105, %v214, 0
      %v282 = vsel %vm105, %v264, 0
      %284 = vmatprep.subr.mxu0 %v270
      %285 = vmatpush1.msra.mxu0 %v268
      %286 = vmatprep.subr.mxu0 0.0
      %287 = vmatpush1.msra.mxu0 0.0
      %288 = vmatprep.subr.mxu0 0.0
      %289 = vmatpush1.msra.mxu0 0.0
      %290 = vmatprep.subr.mxu0 0.0
      %291 = vmatpush1.msra.mxu0 0.0
      %292 = vmatprep.subr.mxu0 0.0
      %293 = vmatpush1.msra.mxu0 0.0
      %294 = vmatprep.subr.mxu0 0.0
      %295 = vmatpush1.msra.mxu0 0.0
      %296 = vmatprep.subr.mxu0 0.0
      %297 = vmatpush1.msra.mxu0 0.0
      %298 = vmatprep.subr.mxu0 0.0
      %299 = vmatpush1.msra.mxu0 0.0
      %300 = vmatprep.subr.mxu0 0.0
      %301 = vmatpush1.msra.mxu0 0.0
      %302 = vmatprep.subr.mxu0 0.0
      %303 = vmatpush1.msra.mxu0 0.0
      %304 = vmatprep.subr.mxu0 0.0
      %305 = vmatpush1.msra.mxu0 0.0
      %306 = vmatprep.subr.mxu0 0.0
      %307 = vmatpush1.msra.mxu0 0.0
      %308 = vmatprep.subr.mxu0 0.0
      %309 = vmatpush1.msra.mxu0 0.0
      %310 = vmatprep.subr.mxu0 0.0
      %311 = vmatpush1.msra.mxu0 0.0
      %312 = vmatprep.subr.mxu0 0.0
      %313 = vmatpush1.msra.mxu0 0.0
      %314 = vmatprep.subr.mxu0 0.0
      %315 = vmatpush1.msra.mxu0 0.0
      %316 = vmatprep.subr.mxu0 0.0
      %317 = vmatpush1.msra.mxu0 0.0
      %318 = vmatprep.subr.mxu0 0.0
      %319 = vmatpush1.msra.mxu0 0.0
      %320 = vmatprep.subr.mxu0 0.0
      %321 = vmatpush1.msra.mxu0 0.0
      %322 = vmatprep.subr.mxu0 0.0
      %323 = vmatpush1.msra.mxu0 0.0
      %324 = vmatprep.subr.mxu0 0.0
      %325 = vmatpush1.msra.mxu0 0.0
      %326 = vmatprep.subr.mxu0 0.0
      %327 = vmatpush1.msra.mxu0 0.0
      %328 = vmatprep.subr.mxu0 0.0
      %329 = vmatpush1.msra.mxu0 0.0
      %330 = vmatprep.subr.mxu0 0.0
      %331 = vmatpush1.msra.mxu0 0.0
      %332 = vmatprep.subr.mxu0 0.0
      %333 = vmatpush1.msra.mxu0 0.0
      %334 = vmatprep.subr.mxu0 0.0
      %335 = vmatpush1.msra.mxu0 0.0
      %336 = vmatprep.subr.mxu0 0.0
      %337 = vmatpush1.msra.mxu0 0.0
      %338 = vmatprep.subr.mxu0 0.0
      %339 = vmatpush1.msra.mxu0 0.0
      %340 = vmatprep.subr.mxu0 0.0
      %341 = vmatpush1.msra.mxu0 0.0
      %342 = vmatprep.subr.mxu0 0.0
      %343 = vmatpush1.msra.mxu0 0.0
      %344 = vmatprep.subr.mxu0 0.0
      %345 = vmatpush1.msra.mxu0 0.0
      %346 = vmatprep.subr.mxu0 0.0
      %347 = vmatpush1.msra.mxu0 0.0
      %348 = vmatprep.mubr.f32.mxu0 0.0
      %349 = vmatmul.mubr.f32.gmra.mrb[0].mxu0 %v266
      %v350 = vpop.f32.mrb[0].mxu0
      %v351 = vadd.f32 %v220, %v350
      %v352 = vpop.f32.mrb[0].mxu0
      %v353 = vadd.f32 %v224, %v352
      %354 = vdwg.mxu0
      %355 = vmatprep.subr.mxu0 %v274
      %356 = vmatpush1.msra.mxu0 %v272
      %357 = vmatprep.subr.mxu0 0.0
      %358 = vmatpush1.msra.mxu0 0.0
      %359 = vmatprep.subr.mxu0 0.0
      %360 = vmatpush1.msra.mxu0 0.0
      %361 = vmatprep.subr.mxu0 0.0
      %362 = vmatpush1.msra.mxu0 0.0
      %363 = vmatprep.subr.mxu0 0.0
      %364 = vmatpush1.msra.mxu0 0.0
      %365 = vmatprep.subr.mxu0 0.0
      %366 = vmatpush1.msra.mxu0 0.0
      %367 = vmatprep.subr.mxu0 0.0
      %368 = vmatpush1.msra.mxu0 0.0
      %369 = vmatprep.subr.mxu0 0.0
      %370 = vmatpush1.msra.mxu0 0.0
      %371 = vmatprep.subr.mxu0 0.0
      %372 = vmatpush1.msra.mxu0 0.0
      %373 = vmatprep.subr.mxu0 0.0
      %374 = vmatpush1.msra.mxu0 0.0
      %375 = vmatprep.subr.mxu0 0.0
      %376 = vmatpush1.msra.mxu0 0.0
      %377 = vmatprep.subr.mxu0 0.0
      %378 = vmatpush1.msra.mxu0 0.0
      %379 = vmatprep.subr.mxu0 0.0
      %380 = vmatpush1.msra.mxu0 0.0
      %381 = vmatprep.subr.mxu0 0.0
      %382 = vmatpush1.msra.mxu0 0.0
      %383 = vmatprep.subr.mxu0 0.0
      %384 = vmatpush1.msra.mxu0 0.0
      %385 = vmatprep.subr.mxu0 0.0
      %386 = vmatpush1.msra.mxu0 0.0
      %387 = vmatprep.subr.mxu0 0.0
      %388 = vmatpush1.msra.mxu0 0.0
      %389 = vmatprep.subr.mxu0 0.0
      %390 = vmatpush1.msra.mxu0 0.0
      %391 = vmatprep.subr.mxu0 0.0
      %392 = vmatpush1.msra.mxu0 0.0
      %393 = vmatprep.subr.mxu0 0.0
      %394 = vmatpush1.msra.mxu0 0.0
      %395 = vmatprep.subr.mxu0 0.0
      %396 = vmatpush1.msra.mxu0 0.0
      %397 = vmatprep.subr.mxu0 0.0
      %398 = vmatpush1.msra.mxu0 0.0
      %399 = vmatprep.subr.mxu0 0.0
      %400 = vmatpush1.msra.mxu0 0.0
      %401 = vmatprep.subr.mxu0 0.0
      %402 = vmatpush1.msra.mxu0 0.0
      %403 = vmatprep.subr.mxu0 0.0
      %404 = vmatpush1.msra.mxu0 0.0
      %405 = vmatprep.subr.mxu0 0.0
      %406 = vmatpush1.msra.mxu0 0.0
      %407 = vmatprep.subr.mxu0 0.0
      %408 = vmatpush1.msra.mxu0 0.0
      %409 = vmatprep.subr.mxu0 0.0
      %410 = vmatpush1.msra.mxu0 0.0
      %411 = vmatprep.subr.mxu0 0.0
      %412 = vmatpush1.msra.mxu0 0.0
      %413 = vmatprep.subr.mxu0 0.0
      %414 = vmatpush1.msra.mxu0 0.0
      %415 = vmatprep.subr.mxu0 0.0
      %416 = vmatpush1.msra.mxu0 0.0
      %417 = vmatprep.subr.mxu0 0.0
      %418 = vmatpush1.msra.mxu0 0.0
      %419 = vmatprep.mubr.f32.mxu0 0.0
      %420 = vmatmul.mubr.f32.gmra.mrb[0].mxu0 %v266
      %v421 = vpop.f32.mrb[0].mxu0
      %v422 = vadd.f32 %v228, %v421
      %v423 = vpop.f32.mrb[0].mxu0
      %v424 = vadd.f32 %v232, %v423
      %425 = vdwg.mxu0
      %426 = vmatprep.subr.mxu0 %v278
      %427 = vmatpush1.msra.mxu0 %v276
      %428 = vmatprep.subr.mxu0 0.0
      %429 = vmatpush1.msra.mxu0 0.0
      %430 = vmatprep.subr.mxu0 0.0
      %431 = vmatpush1.msra.mxu0 0.0
      %432 = vmatprep.subr.mxu0 0.0
      %433 = vmatpush1.msra.mxu0 0.0
      %434 = vmatprep.subr.mxu0 0.0
      %435 = vmatpush1.msra.mxu0 0.0
      %436 = vmatprep.subr.mxu0 0.0
      %437 = vmatpush1.msra.mxu0 0.0
      %438 = vmatprep.subr.mxu0 0.0
      %439 = vmatpush1.msra.mxu0 0.0
      %440 = vmatprep.subr.mxu0 0.0
      %441 = vmatpush1.msra.mxu0 0.0
      %442 = vmatprep.subr.mxu0 0.0
      %443 = vmatpush1.msra.mxu0 0.0
      %444 = vmatprep.subr.mxu0 0.0
      %445 = vmatpush1.msra.mxu0 0.0
      %446 = vmatprep.subr.mxu0 0.0
      %447 = vmatpush1.msra.mxu0 0.0
      %448 = vmatprep.subr.mxu0 0.0
      %449 = vmatpush1.msra.mxu0 0.0
      %450 = vmatprep.subr.mxu0 0.0
      %451 = vmatpush1.msra.mxu0 0.0
      %452 = vmatprep.subr.mxu0 0.0
      %453 = vmatpush1.msra.mxu0 0.0
      %454 = vmatprep.subr.mxu0 0.0
      %455 = vmatpush1.msra.mxu0 0.0
      %456 = vmatprep.subr.mxu0 0.0
      %457 = vmatpush1.msra.mxu0 0.0
      %458 = vmatprep.subr.mxu0 0.0
      %459 = vmatpush1.msra.mxu0 0.0
      %460 = vmatprep.subr.mxu0 0.0
      %461 = vmatpush1.msra.mxu0 0.0
      %462 = vmatprep.subr.mxu0 0.0
      %463 = vmatpush1.msra.mxu0 0.0
      %464 = vmatprep.subr.mxu0 0.0
      %465 = vmatpush1.msra.mxu0 0.0
      %466 = vmatprep.subr.mxu0 0.0
      %467 = vmatpush1.msra.mxu0 0.0
      %468 = vmatprep.subr.mxu0 0.0
      %469 = vmatpush1.msra.mxu0 0.0
      %470 = vmatprep.subr.mxu0 0.0
      %471 = vmatpush1.msra.mxu0 0.0
      %472 = vmatprep.subr.mxu0 0.0
      %473 = vmatpush1.msra.mxu0 0.0
      %474 = vmatprep.subr.mxu0 0.0
      %475 = vmatpush1.msra.mxu0 0.0
      %476 = vmatprep.subr.mxu0 0.0
      %477 = vmatpush1.msra.mxu0 0.0
      %478 = vmatprep.subr.mxu0 0.0
      %479 = vmatpush1.msra.mxu0 0.0
      %480 = vmatprep.subr.mxu0 0.0
      %481 = vmatpush1.msra.mxu0 0.0
      %482 = vmatprep.subr.mxu0 0.0
      %483 = vmatpush1.msra.mxu0 0.0
      %484 = vmatprep.subr.mxu0 0.0
      %485 = vmatpush1.msra.mxu0 0.0
      %486 = vmatprep.subr.mxu0 0.0
      %487 = vmatpush1.msra.mxu0 0.0
      %488 = vmatprep.subr.mxu0 0.0
      %489 = vmatpush1.msra.mxu0 0.0
      %490 = vmatprep.mubr.f32.mxu0 0.0
      %491 = vmatmul.mubr.f32.gmra.mrb[0].mxu0 %v266
      %v492 = vpop.f32.mrb[0].mxu0
      %v493 = vadd.f32 %v236, %v492
      %v494 = vpop.f32.mrb[0].mxu0
      %v495 = vadd.f32 %v240, %v494
      %496 = vdwg.mxu0
      %497 = vmatprep.subr.mxu0 %v282
      %498 = vmatpush1.msra.mxu0 %v280
      %499 = vmatprep.subr.mxu0 0.0
      %500 = vmatpush1.msra.mxu0 0.0
      %501 = vmatprep.subr.mxu0 0.0
      %502 = vmatpush1.msra.mxu0 0.0
      %503 = vmatprep.subr.mxu0 0.0
      %504 = vmatpush1.msra.mxu0 0.0
      %505 = vmatprep.subr.mxu0 0.0
      %506 = vmatpush1.msra.mxu0 0.0
      %507 = vmatprep.subr.mxu0 0.0
      %508 = vmatpush1.msra.mxu0 0.0
      %509 = vmatprep.subr.mxu0 0.0
      %510 = vmatpush1.msra.mxu0 0.0
      %511 = vmatprep.subr.mxu0 0.0
      %512 = vmatpush1.msra.mxu0 0.0
      %513 = vmatprep.subr.mxu0 0.0
      %514 = vmatpush1.msra.mxu0 0.0
      %515 = vmatprep.subr.mxu0 0.0
      %516 = vmatpush1.msra.mxu0 0.0
      %517 = vmatprep.subr.mxu0 0.0
      %518 = vmatpush1.msra.mxu0 0.0
      %519 = vmatprep.subr.mxu0 0.0
      %520 = vmatpush1.msra.mxu0 0.0
      %521 = vmatprep.subr.mxu0 0.0
      %522 = vmatpush1.msra.mxu0 0.0
      %523 = vmatprep.subr.mxu0 0.0
      %524 = vmatpush1.msra.mxu0 0.0
      %525 = vmatprep.subr.mxu0 0.0
      %526 = vmatpush1.msra.mxu0 0.0
      %527 = vmatprep.subr.mxu0 0.0
      %528 = vmatpush1.msra.mxu0 0.0
      %529 = vmatprep.subr.mxu0 0.0
      %530 = vmatpush1.msra.mxu0 0.0
      %531 = vmatprep.subr.mxu0 0.0
      %532 = vmatpush1.msra.mxu0 0.0
      %533 = vmatprep.subr.mxu0 0.0
      %534 = vmatpush1.msra.mxu0 0.0
      %535 = vmatprep.subr.mxu0 0.0
      %536 = vmatpush1.msra.mxu0 0.0
      %537 = vmatprep.subr.mxu0 0.0
      %538 = vmatpush1.msra.mxu0 0.0
      %539 = vmatprep.subr.mxu0 0.0
      %540 = vmatpush1.msra.mxu0 0.0
      %541 = vmatprep.subr.mxu0 0.0
      %542 = vmatpush1.msra.mxu0 0.0
      %543 = vmatprep.subr.mxu0 0.0
      %544 = vmatpush1.msra.mxu0 0.0
      %545 = vmatprep.subr.mxu0 0.0
      %546 = vmatpush1.msra.mxu0 0.0
      %547 = vmatprep.subr.mxu0 0.0
      %548 = vmatpush1.msra.mxu0 0.0
      %549 = vmatprep.subr.mxu0 0.0
      %550 = vmatpush1.msra.mxu0 0.0
      %551 = vmatprep.subr.mxu0 0.0
      %552 = vmatpush1.msra.mxu0 0.0
      %553 = vmatprep.subr.mxu0 0.0
      %554 = vmatpush1.msra.mxu0 0.0
      %555 = vmatprep.subr.mxu0 0.0
      %556 = vmatpush1.msra.mxu0 0.0
      %557 = vmatprep.subr.mxu0 0.0
      %558 = vmatpush1.msra.mxu0 0.0
      %559 = vmatprep.subr.mxu0 0.0
      %560 = vmatpush1.msra.mxu0 0.0
      %561 = vmatprep.mubr.f32.mxu0 0.0
      %562 = vmatmul.mubr.f32.gmra.mrb[0].mxu0 %v266
      %v563 = vpop.f32.mrb[0].mxu0
      %v564 = vadd.f32 %v244, %v563
      %v565 = vpop.f32.mrb[0].mxu0
      %v566 = vadd.f32 %v248, %v565
      %567 = vdwg.mxu0
      %v568 = vld [vmem:[#allocation8] sm:$0xff]
      %v569 = vld [vmem:[#allocation8 + $0x8] sm:$0xff]
      %v570 = vld [vmem:[#allocation8 + $0x10] sm:$0xff]
      %v571 = vld [vmem:[#allocation8 + $0x18] sm:$0xff]
      %v572 = vld [vmem:[#allocation8 + $0x20] sm:$0xff]
      %v573 = vld [vmem:[#allocation8 + $0x28] sm:$0xff]
      %v574 = vld [vmem:[#allocation8 + $0x30] sm:$0xff]
      %v575 = vld [vmem:[#allocation8 + $0x38] sm:$0xff]
      %v576 = vld [vmem:[#allocation8 + $0x40] sm:$0xff]
      %v577 = vld [vmem:[#allocation8 + $0x48] sm:$0xff]
      %v578 = vld [vmem:[#allocation8 + $0x50] sm:$0xff]
      %v579 = vld [vmem:[#allocation8 + $0x58] sm:$0xff]
      %v580 = vld [vmem:[#allocation8 + $0x60] sm:$0xff]
      %v581 = vld [vmem:[#allocation8 + $0x68] sm:$0xff]
      %v582 = vld [vmem:[#allocation8 + $0x70] sm:$0xff]
      %v583 = vld [vmem:[#allocation8 + $0x78] sm:$0xff]
      %v584 = vld [vmem:[#allocation8 + $0x80] sm:$0xff]
      %v585 = vld [vmem:[#allocation8 + $0x88] sm:$0xff]
      %v586 = vld [vmem:[#allocation8 + $0x90] sm:$0xff]
      %v587 = vld [vmem:[#allocation8 + $0x98] sm:$0xff]
      %v588 = vld [vmem:[#allocation8 + $0xa0] sm:$0xff]
      %v589 = vld [vmem:[#allocation8 + $0xa8] sm:$0xff]
      %v590 = vld [vmem:[#allocation8 + $0xb0] sm:$0xff]
      %v591 = vld [vmem:[#allocation8 + $0xb8] sm:$0xff]
      %v592 = vld [vmem:[#allocation8 + $0xc0] sm:$0xff]
      %v593 = vld [vmem:[#allocation8 + $0xc8] sm:$0xff]
      %v594 = vld [vmem:[#allocation8 + $0xd0] sm:$0xff]
      %v595 = vld [vmem:[#allocation8 + $0xd8] sm:$0xff]
      %v596 = vld [vmem:[#allocation8 + $0xe0] sm:$0xff]
      %v597 = vld [vmem:[#allocation8 + $0xe8] sm:$0xff]
      %v598 = vld [vmem:[#allocation8 + $0xf0] sm:$0xff]
      %v599 = vld [vmem:[#allocation8 + $0xf8] sm:$0xff]
      %v600 = vld [vmem:[#allocation8 + $0x100] sm:$0xff]
      %v601 = vld [vmem:[#allocation8 + $0x108] sm:$0xff]
      %v602 = vld [vmem:[#allocation8 + $0x110] sm:$0xff]
      %v603 = vld [vmem:[#allocation8 + $0x118] sm:$0xff]
      %v604 = vld [vmem:[#allocation8 + $0x120] sm:$0xff]
      %v605 = vld [vmem:[#allocation8 + $0x128] sm:$0xff]
      %v606 = vld [vmem:[#allocation8 + $0x130] sm:$0xff]
      %v607 = vld [vmem:[#allocation8 + $0x138] sm:$0xff]
      %v608 = vld [vmem:[#allocation8 + $0x140] sm:$0xff]
      %v609 = vld [vmem:[#allocation8 + $0x148] sm:$0xff]
      %v610 = vld [vmem:[#allocation8 + $0x150] sm:$0xff]
      %v611 = vld [vmem:[#allocation8 + $0x158] sm:$0xff]
      %v612 = vld [vmem:[#allocation8 + $0x160] sm:$0xff]
      %v613 = vld [vmem:[#allocation8 + $0x168] sm:$0xff]
      %v614 = vld [vmem:[#allocation8 + $0x170] sm:$0xff]
      %v615 = vld [vmem:[#allocation8 + $0x178] sm:$0xff]
      %v616 = vld [vmem:[#allocation8 + $0x180] sm:$0xff]
      %v617 = vld [vmem:[#allocation8 + $0x188] sm:$0xff]
      %v618 = vld [vmem:[#allocation8 + $0x190] sm:$0xff]
      %v619 = vld [vmem:[#allocation8 + $0x198] sm:$0xff]
      %v620 = vld [vmem:[#allocation8 + $0x1a0] sm:$0xff]
      %v621 = vld [vmem:[#allocation8 + $0x1a8] sm:$0xff]
      %v622 = vld [vmem:[#allocation8 + $0x1b0] sm:$0xff]
      %v623 = vld [vmem:[#allocation8 + $0x1b8] sm:$0xff]
      %v624 = vld [vmem:[#allocation8 + $0x1c0] sm:$0xff]
      %v625 = vld [vmem:[#allocation8 + $0x1c8] sm:$0xff]
      %v626 = vld [vmem:[#allocation8 + $0x1d0] sm:$0xff]
      %v627 = vld [vmem:[#allocation8 + $0x1d8] sm:$0xff]
      %v628 = vld [vmem:[#allocation8 + $0x1e0] sm:$0xff]
      %v629 = vld [vmem:[#allocation8 + $0x1e8] sm:$0xff]
      %v630 = vld [vmem:[#allocation8 + $0x1f0] sm:$0xff]
      %v631 = vld [vmem:[#allocation8 + $0x1f8] sm:$0xff]
      %v632 = vld [vmem:[#allocation8 + $0x200] sm:$0xff]
      %v633 = vld [vmem:[#allocation8 + $0x208] sm:$0xff]
      %v634 = vld [vmem:[#allocation8 + $0x210] sm:$0xff]
      %v635 = vld [vmem:[#allocation8 + $0x218] sm:$0xff]
      %v636 = vld [vmem:[#allocation8 + $0x220] sm:$0xff]
      %v637 = vld [vmem:[#allocation8 + $0x228] sm:$0xff]
      %v638 = vld [vmem:[#allocation8 + $0x230] sm:$0xff]
      %v639 = vld [vmem:[#allocation8 + $0x238] sm:$0xff]
      %v640 = vld [vmem:[#allocation8 + $0x240] sm:$0xff]
      %v641 = vld [vmem:[#allocation8 + $0x248] sm:$0xff]
      %v642 = vld [vmem:[#allocation8 + $0x250] sm:$0xff]
      %v643 = vld [vmem:[#allocation8 + $0x258] sm:$0xff]
      %v644 = vld [vmem:[#allocation8 + $0x260] sm:$0xff]
      %v645 = vld [vmem:[#allocation8 + $0x268] sm:$0xff]
      %v646 = vld [vmem:[#allocation8 + $0x270] sm:$0xff]
      %v647 = vld [vmem:[#allocation8 + $0x278] sm:$0xff]
      %v648 = vld [vmem:[#allocation8 + $0x280] sm:$0xff]
      %v649 = vld [vmem:[#allocation8 + $0x288] sm:$0xff]
      %v650 = vld [vmem:[#allocation8 + $0x290] sm:$0xff]
      %v651 = vld [vmem:[#allocation8 + $0x298] sm:$0xff]
      %v652 = vld [vmem:[#allocation8 + $0x2a0] sm:$0xff]
      %v653 = vld [vmem:[#allocation8 + $0x2a8] sm:$0xff]
      %v654 = vld [vmem:[#allocation8 + $0x2b0] sm:$0xff]
      %v655 = vld [vmem:[#allocation8 + $0x2b8] sm:$0xff]
      %v656 = vld [vmem:[#allocation8 + $0x2c0] sm:$0xff]
      %v657 = vld [vmem:[#allocation8 + $0x2c8] sm:$0xff]
      %v658 = vld [vmem:[#allocation8 + $0x2d0] sm:$0xff]
      %v659 = vld [vmem:[#allocation8 + $0x2d8] sm:$0xff]
      %v660 = vld [vmem:[#allocation8 + $0x2e0] sm:$0xff]
      %v661 = vld [vmem:[#allocation8 + $0x2e8] sm:$0xff]
      %v662 = vld [vmem:[#allocation8 + $0x2f0] sm:$0xff]
      %v663 = vld [vmem:[#allocation8 + $0x2f8] sm:$0xff]
      %v664 = vld [vmem:[#allocation8 + $0x300] sm:$0xff]
      %v665 = vld [vmem:[#allocation8 + $0x308] sm:$0xff]
      %v666 = vld [vmem:[#allocation8 + $0x310] sm:$0xff]
      %v667 = vld [vmem:[#allocation8 + $0x318] sm:$0xff]
      %v668 = vld [vmem:[#allocation8 + $0x320] sm:$0xff]
      %v669 = vld [vmem:[#allocation8 + $0x328] sm:$0xff]
      %v670 = vld [vmem:[#allocation8 + $0x330] sm:$0xff]
      %v671 = vld [vmem:[#allocation8 + $0x338] sm:$0xff]
      %v672 = vld [vmem:[#allocation8 + $0x340] sm:$0xff]
      %v673 = vld [vmem:[#allocation8 + $0x348] sm:$0xff]
      %v674 = vld [vmem:[#allocation8 + $0x350] sm:$0xff]
      %v675 = vld [vmem:[#allocation8 + $0x358] sm:$0xff]
      %v676 = vld [vmem:[#allocation8 + $0x360] sm:$0xff]
      %v677 = vld [vmem:[#allocation8 + $0x368] sm:$0xff]
      %v678 = vld [vmem:[#allocation8 + $0x370] sm:$0xff]
      %v679 = vld [vmem:[#allocation8 + $0x378] sm:$0xff]
      %v680 = vld [vmem:[#allocation8 + $0x380] sm:$0xff]
      %v681 = vld [vmem:[#allocation8 + $0x388] sm:$0xff]
      %v682 = vld [vmem:[#allocation8 + $0x390] sm:$0xff]
      %v683 = vld [vmem:[#allocation8 + $0x398] sm:$0xff]
      %v684 = vld [vmem:[#allocation8 + $0x3a0] sm:$0xff]
      %v685 = vld [vmem:[#allocation8 + $0x3a8] sm:$0xff]
      %v686 = vld [vmem:[#allocation8 + $0x3b0] sm:$0xff]
      %v687 = vld [vmem:[#allocation8 + $0x3b8] sm:$0xff]
      %v688 = vld [vmem:[#allocation8 + $0x3c0] sm:$0xff]
      %v689 = vld [vmem:[#allocation8 + $0x3c8] sm:$0xff]
      %v690 = vld [vmem:[#allocation8 + $0x3d0] sm:$0xff]
      %v691 = vld [vmem:[#allocation8 + $0x3d8] sm:$0xff]
      %v692 = vld [vmem:[#allocation8 + $0x3e0] sm:$0xff]
      %v693 = vld [vmem:[#allocation8 + $0x3e8] sm:$0xff]
      %v694 = vld [vmem:[#allocation8 + $0x3f0] sm:$0xff]
      %v695 = vld [vmem:[#allocation8 + $0x3f8] sm:$0xff]
      %v696 = vld [vmem:[%s1] sm:$0xff]
      %v697 = vld [vmem:[%s5] sm:$0x1]
      %699 = vset.pattern.permute.xlu0 0
      %700 = vperm.xlu0 %699, %v696
      %v701 = vpop.permute.xlu0 %700
      %v704 = vlaneseq
      %v705 = vshrl.u32 %v704, 7
      %v706 = vsub.s32 0, %v705
      %v707 = vrot.slane %v697, %v706
      %v709 = vmul.f32 %v701, %v707
      %710 = vmatprep.subr.mxu0 0.0
      %711 = vmatpush1.msra.mxu0 %v568
      %712 = vmatprep.subr.mxu0 0.0
      %713 = vmatpush1.msra.mxu0 %v569
      %714 = vmatprep.subr.mxu0 0.0
      %715 = vmatpush1.msra.mxu0 %v570
      %716 = vmatprep.subr.mxu0 0.0
      %717 = vmatpush1.msra.mxu0 %v571
      %718 = vmatprep.subr.mxu0 0.0
      %719 = vmatpush1.msra.mxu0 %v572
      %720 = vmatprep.subr.mxu0 0.0
      %721 = vmatpush1.msra.mxu0 %v573
      %722 = vmatprep.subr.mxu0 0.0
      %723 = vmatpush1.msra.mxu0 %v574
      %724 = vmatprep.subr.mxu0 0.0
      %725 = vmatpush1.msra.mxu0 %v575
      %726 = vmatprep.subr.mxu0 0.0
      %727 = vmatpush1.msra.mxu0 %v576
      %728 = vmatprep.subr.mxu0 0.0
      %729 = vmatpush1.msra.mxu0 %v577
      %730 = vmatprep.subr.mxu0 0.0
      %731 = vmatpush1.msra.mxu0 %v578
      %732 = vmatprep.subr.mxu0 0.0
      %733 = vmatpush1.msra.mxu0 %v579
      %734 = vmatprep.subr.mxu0 0.0
      %735 = vmatpush1.msra.mxu0 %v580
      %736 = vmatprep.subr.mxu0 0.0
      %737 = vmatpush1.msra.mxu0 %v581
      %738 = vmatprep.subr.mxu0 0.0
      %739 = vmatpush1.msra.mxu0 %v582
      %740 = vmatprep.subr.mxu0 0.0
      %741 = vmatpush1.msra.mxu0 %v583
      %742 = vmatprep.subr.mxu0 0.0
      %743 = vmatpush1.msra.mxu0 %v584
      %744 = vmatprep.subr.mxu0 0.0
      %745 = vmatpush1.msra.mxu0 %v585
      %746 = vmatprep.subr.mxu0 0.0
      %747 = vmatpush1.msra.mxu0 %v586
      %748 = vmatprep.subr.mxu0 0.0
      %749 = vmatpush1.msra.mxu0 %v587
      %750 = vmatprep.subr.mxu0 0.0
      %751 = vmatpush1.msra.mxu0 %v588
      %752 = vmatprep.subr.mxu0 0.0
      %753 = vmatpush1.msra.mxu0 %v589
      %754 = vmatprep.subr.mxu0 0.0
      %755 = vmatpush1.msra.mxu0 %v590
      %756 = vmatprep.subr.mxu0 0.0
      %757 = vmatpush1.msra.mxu0 %v591
      %758 = vmatprep.subr.mxu0 0.0
      %759 = vmatpush1.msra.mxu0 %v592
      %760 = vmatprep.subr.mxu0 0.0
      %761 = vmatpush1.msra.mxu0 %v593
      %762 = vmatprep.subr.mxu0 0.0
      %763 = vmatpush1.msra.mxu0 %v594
      %764 = vmatprep.subr.mxu0 0.0
      %765 = vmatpush1.msra.mxu0 %v595
      %766 = vmatprep.subr.mxu0 0.0
      %767 = vmatpush1.msra.mxu0 %v596
      %768 = vmatprep.subr.mxu0 0.0
      %769 = vmatpush1.msra.mxu0 %v597
      %770 = vmatprep.subr.mxu0 0.0
      %771 = vmatpush1.msra.mxu0 %v598
      %772 = vmatprep.subr.mxu0 0.0
      %773 = vmatpush1.msra.mxu0 %v599
      %774 = vmatprep.mubr.f32.mxu0 %v353
      %775 = vmatmul.mubr.f32.gmra.mrb[0].mxu0 %v351
      %v776 = vpop.f32.mrb[0].mxu0
      %v777 = vadd.f32 %v709, %v776
      %v778 = vpop.f32.mrb[0].mxu0
      %779 = vdwg.mxu0
      %780 = vmatprep.subr.mxu0 0.0
      %781 = vmatpush1.msra.mxu0 %v600
      %782 = vmatprep.subr.mxu0 0.0
      %783 = vmatpush1.msra.mxu0 %v601
      %784 = vmatprep.subr.mxu0 0.0
      %785 = vmatpush1.msra.mxu0 %v602
      %786 = vmatprep.subr.mxu0 0.0
      %787 = vmatpush1.msra.mxu0 %v603
      %788 = vmatprep.subr.mxu0 0.0
      %789 = vmatpush1.msra.mxu0 %v604
      %790 = vmatprep.subr.mxu0 0.0
      %791 = vmatpush1.msra.mxu0 %v605
      %792 = vmatprep.subr.mxu0 0.0
      %793 = vmatpush1.msra.mxu0 %v606
      %794 = vmatprep.subr.mxu0 0.0
      %795 = vmatpush1.msra.mxu0 %v607
      %796 = vmatprep.subr.mxu0 0.0
      %797 = vmatpush1.msra.mxu0 %v608
      %798 = vmatprep.subr.mxu0 0.0
      %799 = vmatpush1.msra.mxu0 %v609
      %800 = vmatprep.subr.mxu0 0.0
      %801 = vmatpush1.msra.mxu0 %v610
      %802 = vmatprep.subr.mxu0 0.0
      %803 = vmatpush1.msra.mxu0 %v611
      %804 = vmatprep.subr.mxu0 0.0
      %805 = vmatpush1.msra.mxu0 %v612
      %806 = vmatprep.subr.mxu0 0.0
      %807 = vmatpush1.msra.mxu0 %v613
      %808 = vmatprep.subr.mxu0 0.0
      %809 = vmatpush1.msra.mxu0 %v614
      %810 = vmatprep.subr.mxu0 0.0
      %811 = vmatpush1.msra.mxu0 %v615
      %812 = vmatprep.subr.mxu0 0.0
      %813 = vmatpush1.msra.mxu0 %v616
      %814 = vmatprep.subr.mxu0 0.0
      %815 = vmatpush1.msra.mxu0 %v617
      %816 = vmatprep.subr.mxu0 0.0
      %817 = vmatpush1.msra.mxu0 %v618
      %818 = vmatprep.subr.mxu0 0.0
      %819 = vmatpush1.msra.mxu0 %v619
      %820 = vmatprep.subr.mxu0 0.0
      %821 = vmatpush1.msra.mxu0 %v620
      %822 = vmatprep.subr.mxu0 0.0
      %823 = vmatpush1.msra.mxu0 %v621
      %824 = vmatprep.subr.mxu0 0.0
      %825 = vmatpush1.msra.mxu0 %v622
      %826 = vmatprep.subr.mxu0 0.0
      %827 = vmatpush1.msra.mxu0 %v623
      %828 = vmatprep.subr.mxu0 0.0
      %829 = vmatpush1.msra.mxu0 %v624
      %830 = vmatprep.subr.mxu0 0.0
      %831 = vmatpush1.msra.mxu0 %v625
      %832 = vmatprep.subr.mxu0 0.0
      %833 = vmatpush1.msra.mxu0 %v626
      %834 = vmatprep.subr.mxu0 0.0
      %835 = vmatpush1.msra.mxu0 %v627
      %836 = vmatprep.subr.mxu0 0.0
      %837 = vmatpush1.msra.mxu0 %v628
      %838 = vmatprep.subr.mxu0 0.0
      %839 = vmatpush1.msra.mxu0 %v629
      %840 = vmatprep.subr.mxu0 0.0
      %841 = vmatpush1.msra.mxu0 %v630
      %842 = vmatprep.subr.mxu0 0.0
      %843 = vmatpush1.msra.mxu0 %v631
      %844 = vmatprep.mubr.f32.mxu0 %v424
      %845 = vmatmul.mubr.f32.gmra.mrb[0].mxu0 %v422
      %v846 = vpop.f32.mrb[0].mxu0
      %v847 = vadd.f32 %v777, %v846
      %v848 = vpop.f32.mrb[0].mxu0
      %849 = vdwg.mxu0
      %850 = vmatprep.subr.mxu0 0.0
      %851 = vmatpush1.msra.mxu0 %v632
      %852 = vmatprep.subr.mxu0 0.0
      %853 = vmatpush1.msra.mxu0 %v633
      %854 = vmatprep.subr.mxu0 0.0
      %855 = vmatpush1.msra.mxu0 %v634
      %856 = vmatprep.subr.mxu0 0.0
      %857 = vmatpush1.msra.mxu0 %v635
      %858 = vmatprep.subr.mxu0 0.0
      %859 = vmatpush1.msra.mxu0 %v636
      %860 = vmatprep.subr.mxu0 0.0
      %861 = vmatpush1.msra.mxu0 %v637
      %862 = vmatprep.subr.mxu0 0.0
      %863 = vmatpush1.msra.mxu0 %v638
      %864 = vmatprep.subr.mxu0 0.0
      %865 = vmatpush1.msra.mxu0 %v639
      %866 = vmatprep.subr.mxu0 0.0
      %867 = vmatpush1.msra.mxu0 %v640
      %868 = vmatprep.subr.mxu0 0.0
      %869 = vmatpush1.msra.mxu0 %v641
      %870 = vmatprep.subr.mxu0 0.0
      %871 = vmatpush1.msra.mxu0 %v642
      %872 = vmatprep.subr.mxu0 0.0
      %873 = vmatpush1.msra.mxu0 %v643
      %874 = vmatprep.subr.mxu0 0.0
      %875 = vmatpush1.msra.mxu0 %v644
      %876 = vmatprep.subr.mxu0 0.0
      %877 = vmatpush1.msra.mxu0 %v645
      %878 = vmatprep.subr.mxu0 0.0
      %879 = vmatpush1.msra.mxu0 %v646
      %880 = vmatprep.subr.mxu0 0.0
      %881 = vmatpush1.msra.mxu0 %v647
      %882 = vmatprep.subr.mxu0 0.0
      %883 = vmatpush1.msra.mxu0 %v648
      %884 = vmatprep.subr.mxu0 0.0
      %885 = vmatpush1.msra.mxu0 %v649
      %886 = vmatprep.subr.mxu0 0.0
      %887 = vmatpush1.msra.mxu0 %v650
      %888 = vmatprep.subr.mxu0 0.0
      %889 = vmatpush1.msra.mxu0 %v651
      %890 = vmatprep.subr.mxu0 0.0
      %891 = vmatpush1.msra.mxu0 %v652
      %892 = vmatprep.subr.mxu0 0.0
      %893 = vmatpush1.msra.mxu0 %v653
      %894 = vmatprep.subr.mxu0 0.0
      %895 = vmatpush1.msra.mxu0 %v654
      %896 = vmatprep.subr.mxu0 0.0
      %897 = vmatpush1.msra.mxu0 %v655
      %898 = vmatprep.subr.mxu0 0.0
      %899 = vmatpush1.msra.mxu0 %v656
      %900 = vmatprep.subr.mxu0 0.0
      %901 = vmatpush1.msra.mxu0 %v657
      %902 = vmatprep.subr.mxu0 0.0
      %903 = vmatpush1.msra.mxu0 %v658
      %904 = vmatprep.subr.mxu0 0.0
      %905 = vmatpush1.msra.mxu0 %v659
      %906 = vmatprep.subr.mxu0 0.0
      %907 = vmatpush1.msra.mxu0 %v660
      %908 = vmatprep.subr.mxu0 0.0
      %909 = vmatpush1.msra.mxu0 %v661
      %910 = vmatprep.subr.mxu0 0.0
      %911 = vmatpush1.msra.mxu0 %v662
      %912 = vmatprep.subr.mxu0 0.0
      %913 = vmatpush1.msra.mxu0 %v663
      %914 = vmatprep.mubr.f32.mxu0 %v495
      %915 = vmatmul.mubr.f32.gmra.mrb[0].mxu0 %v493
      %v916 = vpop.f32.mrb[0].mxu0
      %v917 = vadd.f32 %v847, %v916
      %v918 = vpop.f32.mrb[0].mxu0
      %919 = vdwg.mxu0
      %920 = vmatprep.subr.mxu0 0.0
      %921 = vmatpush1.msra.mxu0 %v664
      %922 = vmatprep.subr.mxu0 0.0
      %923 = vmatpush1.msra.mxu0 %v665
      %924 = vmatprep.subr.mxu0 0.0
      %925 = vmatpush1.msra.mxu0 %v666
      %926 = vmatprep.subr.mxu0 0.0
      %927 = vmatpush1.msra.mxu0 %v667
      %928 = vmatprep.subr.mxu0 0.0
      %929 = vmatpush1.msra.mxu0 %v668
      %930 = vmatprep.subr.mxu0 0.0
      %931 = vmatpush1.msra.mxu0 %v669
      %932 = vmatprep.subr.mxu0 0.0
      %933 = vmatpush1.msra.mxu0 %v670
      %934 = vmatprep.subr.mxu0 0.0
      %935 = vmatpush1.msra.mxu0 %v671
      %936 = vmatprep.subr.mxu0 0.0
      %937 = vmatpush1.msra.mxu0 %v672
      %938 = vmatprep.subr.mxu0 0.0
      %939 = vmatpush1.msra.mxu0 %v673
      %940 = vmatprep.subr.mxu0 0.0
      %941 = vmatpush1.msra.mxu0 %v674
      %942 = vmatprep.subr.mxu0 0.0
      %943 = vmatpush1.msra.mxu0 %v675
      %944 = vmatprep.subr.mxu0 0.0
      %945 = vmatpush1.msra.mxu0 %v676
      %946 = vmatprep.subr.mxu0 0.0
      %947 = vmatpush1.msra.mxu0 %v677
      %948 = vmatprep.subr.mxu0 0.0
      %949 = vmatpush1.msra.mxu0 %v678
      %950 = vmatprep.subr.mxu0 0.0
      %951 = vmatpush1.msra.mxu0 %v679
      %952 = vmatprep.subr.mxu0 0.0
      %953 = vmatpush1.msra.mxu0 %v680
      %954 = vmatprep.subr.mxu0 0.0
      %955 = vmatpush1.msra.mxu0 %v681
      %956 = vmatprep.subr.mxu0 0.0
      %957 = vmatpush1.msra.mxu0 %v682
      %958 = vmatprep.subr.mxu0 0.0
      %959 = vmatpush1.msra.mxu0 %v683
      %960 = vmatprep.subr.mxu0 0.0
      %961 = vmatpush1.msra.mxu0 %v684
      %962 = vmatprep.subr.mxu0 0.0
      %963 = vmatpush1.msra.mxu0 %v685
      %964 = vmatprep.subr.mxu0 0.0
      %965 = vmatpush1.msra.mxu0 %v686
      %966 = vmatprep.subr.mxu0 0.0
      %967 = vmatpush1.msra.mxu0 %v687
      %968 = vmatprep.subr.mxu0 0.0
      %969 = vmatpush1.msra.mxu0 %v688
      %970 = vmatprep.subr.mxu0 0.0
      %971 = vmatpush1.msra.mxu0 %v689
      %972 = vmatprep.subr.mxu0 0.0
      %973 = vmatpush1.msra.mxu0 %v690
      %974 = vmatprep.subr.mxu0 0.0
      %975 = vmatpush1.msra.mxu0 %v691
      %976 = vmatprep.subr.mxu0 0.0
      %977 = vmatpush1.msra.mxu0 %v692
      %978 = vmatprep.subr.mxu0 0.0
      %979 = vmatpush1.msra.mxu0 %v693
      %980 = vmatprep.subr.mxu0 0.0
      %981 = vmatpush1.msra.mxu0 %v694
      %982 = vmatprep.subr.mxu0 0.0
      %983 = vmatpush1.msra.mxu0 %v695
      %984 = vmatprep.mubr.f32.mxu0 %v566
      %985 = vmatmul.mubr.f32.gmra.mrb[0].mxu0 %v564
      %v986 = vpop.f32.mrb[0].mxu0
      %v987 = vadd.f32 %v917, %v986
      %v988 = vpop.f32.mrb[0].mxu0
      %989 = vdwg.mxu0
      %v990 = vld [vmem:[%s6] sm:$0x1]
      %v992 = vlaneseq
      %v993 = vshrl.u32 %v992, 7
      %v994 = vsub.s32 0, %v993
      %v995 = vrot.slane %v990, %v994
      %v997 = vadd.f32 %v987, %v995
      %998 = vst [vmem:[#allocation9] sm:$0xff] %v997
    $region49: #{tpu_custom_call.1} parent=1 // pred_fallthru
      _
    // Predicated region
    $region50: #{tpu_custom_call.1} parent=1 // pred_check
      _
    $region51: #{tpu_custom_call.1} parent=1 // pred_check_branch
      %1000 = sbr.rel (0) target = $region53
    $region52: #{tpu_custom_call.1} parent=1 // pred_region
      %s1002 = ssub.s32 128, 128
      %1003 = vsyncadd [#allocation5], %s1002
      %s1005 = sshll.u32 [#allocation9], 4
      %s1006 = int_to_ptr.vmem [resolvable:$true] %s1005
      %1008 = dma.vmem_to_hbm [thread:$0]  %s1006, 128, %s7, [#allocation5]
    $region53: #{tpu_custom_call.1} parent=1 // pred_fallthru
      _
    // Predicated region
    $region54: #{tpu_custom_call.1} parent=1 // pred_check
      _
    $region55: #{tpu_custom_call.1} parent=1 // pred_check_branch
      %1010 = sbr.rel (0) target = $region57
    $region56: #{tpu_custom_call.1} parent=1 // pred_region
      %1011 = dma.done [#allocation5], 128
    $region57: #{tpu_custom_call.1} parent=1 // pred_fallthru
      _
    %1012 = vsyncpa [#allocation4], 1
    %1013 = vsyncpa [#allocation7], 1
    %1014 = vsyncpa [#allocation5], 1

</llo_original>
